<compile_context>
chip_gen: v6e
topology: v6e:2x2x1
jax: 0.10.0
libtpu: 0.0.40
codegen_flags: <defaults>
</compile_context>

<pallas_src>
import functools

import jax
import jax.numpy as jnp
from jax import lax
from jax.experimental import pallas as pl
from jax.experimental.pallas import tpu as pltpu


def resblock_kernel(x_ref, w_ref, b_ref, o_ref, *, H, W, K, res_scale):
    """x_ref/o_ref: (1, C, H*W); w_ref: (2, C, K*K*C); b_ref: (2, C, 1)."""
    C, HW = x_ref.shape[1], x_ref.shape[2]
    pad = K // 2
    KK = K * K

    # --- hoisted once per grid step, shared by both convs -------------------
    # Border masks per kernel tap (zero-padding semantics).  y-conditions need
    # no division:  y >= a  <=>  p >= a*W  for flat p = y*W + x.
    lane = lax.broadcasted_iota(jnp.int32, (1, HW), 1)
    xx = (lane & (W - 1)) if (W & (W - 1)) == 0 else (lane % W)
    masks = []
    for ky in range(K):
        dy = ky - pad
        for kx in range(K):
            dx = kx - pad
            conds = []
            if dy < 0:
                conds.append(lane >= (-dy) * W)
            if dy > 0:
                conds.append(lane < (H - dy) * W)
            if dx < 0:
                conds.append(xx >= -dx)
            if dx > 0:
                conds.append(xx < W - dx)
            m = None
            for c in conds:
                m = c if m is None else (m & c)
            masks.append(m)

    # Weight / bias loads + casts hoisted (single vld stream each).  Weights
    # are fed to the MXU in bf16 (single pass); accumulation stays f32.
    w1 = w_ref[0].astype(jnp.bfloat16)          # (C, KK*C)
    w2 = w_ref[1].astype(jnp.bfloat16)
    b1 = b_ref[0].astype(jnp.float32)           # (C, 1)
    b2 = b_ref[1].astype(jnp.float32)

    def conv_same(src, w_bf, b_f32):
        """'same'-padded KxK conv of a (C, HW) slab as ONE MXU matmul."""
        slabs = []
        for t in range(KK):
            ky, kx = divmod(t, K)
            dy, dx = ky - pad, kx - pad
            s = dy * W + dx                     # flat source offset
            shifted = src if s == 0 else pltpu.roll(src, (-s) % HW, 1)
            m = masks[t]
            if m is not None:
                shifted = jnp.where(m, shifted, 0.0)
            slabs.append(shifted.astype(jnp.bfloat16))
        rhs = jnp.concatenate(slabs, axis=0)    # (KK*C, HW) bf16
        return jnp.dot(w_bf, rhs, preferred_element_type=jnp.float32) + b_f32

    x = x_ref[0].astype(jnp.float32)             # (C, HW) lane-dense load
    h = jnp.maximum(conv_same(x, w1, b1), 0.0)   # conv1 + bias + ReLU
    y = conv_same(h, w2, b2)                     # conv2 + bias
    if res_scale != 1.0:                         # static: skip mul when == 1
        y = y * res_scale
    o_ref[0] = (y + x).astype(o_ref.dtype)       # residual, lane-dense store


def resblock_forward(x, w1, b1, w2, b2, *, res_scale=1.0):
    B, C, H, W = x.shape
    O, I, K, K2 = w1.shape
    assert (O, I, K2) == (C, C, K) and w2.shape == w1.shape
    assert b1.shape == (C,) and b2.shape == (C,)
    HW = H * W
    KK = K * K

    # Pack both convs into one weight / one bias array (one DMA stream each),
    # pre-reshaped so the kernel does NO per-tap weight loads:
    #   w_packed[l, o, (ky*K + kx)*C + i] == w_l[o, i, ky, kx]
    w_packed = jnp.stack(
        [w1.transpose(0, 2, 3, 1).reshape(C, KK * C),
         w2.transpose(0, 2, 3, 1).reshape(C, KK * C)], axis=0)
    b_packed = jnp.stack([b1, b2], axis=0).reshape(2, C, 1)

    xg = x.reshape(B, C, HW)

    kernel = functools.partial(resblock_kernel, H=H, W=W, K=K,
                               res_scale=float(res_scale))
    flops = 4 * B * C * C * KK * HW              # 2 convs, 2 flops per MAC
    bytes_accessed = (2 * xg.size * xg.dtype.itemsize
                      + w_packed.size * w_packed.dtype.itemsize
                      + b_packed.size * b_packed.dtype.itemsize)

    # TODO(synk): for large feature maps (e.g. C=64, 512x512 on v7x's 64 MiB
    # VMEM) add a row-band grid axis with a `pad`-row halo instead of holding
    # the whole (C, H*W) image in one VMEM block.
    out = pl.pallas_call(
        kernel,
        out_shape=jax.ShapeDtypeStruct((B, C, HW), x.dtype),
        grid_spec=pltpu.PrefetchScalarGridSpec(
            num_scalar_prefetch=0,
            grid=(B,),                           # one image per step
            in_specs=[
                pl.BlockSpec((1, C, HW), lambda i: (i, 0, 0)),
                pl.BlockSpec((2, C, KK * C), lambda i: (0, 0, 0)),
                pl.BlockSpec((2, C, 1), lambda i: (0, 0, 0)),
            ],
            out_specs=pl.BlockSpec((1, C, HW), lambda i: (i, 0, 0)),
        ),
        compiler_params=pltpu.CompilerParams(
            dimension_semantics=("parallel",)),   # megacore-shard the batch
        cost_estimate=pl.CostEstimate(flops=flops, transcendentals=0,
                                      bytes_accessed=bytes_accessed),
    )(xg, w_packed, b_packed)
    return out.reshape(B, C, H, W)


def ref_forward(x, w1, b1, w2, b2, *, res_scale=1.0):
    """Pure-JAX f32 reference mirroring the PyTorch ResBlock forward."""
    pad = w1.shape[-1] // 2
    dn = lax.conv_dimension_numbers(x.shape, w1.shape, ("NCHW", "OIHW", "NCHW"))
    y = lax.conv_general_dilated(x, w1, (1, 1), [(pad, pad), (pad, pad)],
                                 dimension_numbers=dn,
                                 precision=lax.Precision.HIGHEST)
    y = y + b1.reshape(1, -1, 1, 1)
    y = jnp.maximum(y, 0.0)
    y = lax.conv_general_dilated(y, w2, (1, 1), [(pad, pad), (pad, pad)],
                                 dimension_numbers=dn,
                                 precision=lax.Precision.HIGHEST)
    y = y + b2.reshape(1, -1, 1, 1)
    return y * res_scale + x


def _run_case(key, B, C, H, W, K, res_scale):
    k = jax.random.split(key, 5)
    x = jax.random.normal(k[0], (B, C, H, W), jnp.float32)
    scale = 1.0 / (C * K * K) ** 0.5
    w1 = scale * jax.random.normal(k[1], (C, C, K, K), jnp.float32)
    b1 = 0.1 * jax.random.normal(k[2], (C,), jnp.float32)
    w2 = scale * jax.random.normal(k[3], (C, C, K, K), jnp.float32)
    b2 = 0.1 * jax.random.normal(k[4], (C,), jnp.float32)

    out = jax.block_until_ready(
        resblock_forward(x, w1, b1, w2, b2, res_scale=res_scale))
    ref = ref_forward(x, w1, b1, w2, b2, res_scale=res_scale)
    assert out.shape == x.shape
    # bf16 single-pass MXU vs f32 HIGHEST reference -> loosened tolerance
    # (real tap/mask bugs produce O(0.1-1) errors, far above this).
    assert jnp.allclose(out, ref, atol=3e-2, rtol=3e-2), (
        float(jnp.max(jnp.abs(out - ref))))


if __name__ == "__main__":
    key = jax.random.PRNGKey(0)
    k1, k2 = jax.random.split(key)
    # Shapes implied by the module: n_feat=4, kernel_size=3, res_scale=1.
    _run_case(k1, B=2, C=4, H=16, W=16, K=3, res_scale=1.0)
    # Non-square, non-power-of-two W (exercises the `lane % W` mask path) and
    # res_scale != 1.
    _run_case(k2, B=2, C=8, H=16, W=24, K=3, res_scale=0.5)
    print("KERNEL_OK")
</pallas_src>

<mosaic_0001>
module attributes {stable_mosaic.version = 11 : i64} {
  func.func @resblock_kernel(%arg0: i32, %arg1: memref<1x4x256xf32, #tpu.memory_space<vmem>>, %arg2: memref<2x4x36xf32, #tpu.memory_space<vmem>>, %arg3: memref<2x4x1xf32, #tpu.memory_space<vmem>>, %arg4: memref<1x4x256xf32, #tpu.memory_space<vmem>>) attributes {dimension_semantics = [#tpu.dimension_semantics<parallel>], iteration_bounds = array<i64: 2>, scalar_prefetch = 0 : i64, scratch_operands = 0 : i64, tpu.core_type = #tpu.core_type<tc>, window_params = [{transform_indices = @transform_0, window_bounds = array<i64: 1, 4, 256>}, {pipeline_mode = #tpu.pipeline_mode<synchronous>, transform_indices = @transform_1, window_bounds = array<i64: 2, 4, 36>}, {pipeline_mode = #tpu.pipeline_mode<synchronous>, transform_indices = @transform_2, window_bounds = array<i64: 2, 4, 1>}, {transform_indices = @transform_3, window_bounds = array<i64: 1, 4, 256>}]} {
    %0 = tpu.iota {dimensions = array<i32: 1>} : vector<1x256xi32>
    %c15_i32 = arith.constant 15 : i32
    %1 = vector.broadcast %c15_i32 : i32 to vector<1x256xi32>
    %2 = arith.andi %0, %1 : vector<1x256xi32>
    %c16_i32 = arith.constant 16 : i32
    %3 = vector.broadcast %c16_i32 : i32 to vector<1x256xi32>
    %4 = arith.cmpi sge, %0, %3 : vector<1x256xi32>
    %c1_i32 = arith.constant 1 : i32
    %5 = vector.broadcast %c1_i32 : i32 to vector<1x256xi32>
    %6 = arith.cmpi sge, %2, %5 : vector<1x256xi32>
    %7 = arith.andi %4, %6 : vector<1x256xi1>
    %c16_i32_0 = arith.constant 16 : i32
    %8 = vector.broadcast %c16_i32_0 : i32 to vector<1x256xi32>
    %9 = arith.cmpi sge, %0, %8 : vector<1x256xi32>
    %c16_i32_1 = arith.constant 16 : i32
    %10 = vector.broadcast %c16_i32_1 : i32 to vector<1x256xi32>
    %11 = arith.cmpi sge, %0, %10 : vector<1x256xi32>
    %c15_i32_2 = arith.constant 15 : i32
    %12 = vector.broadcast %c15_i32_2 : i32 to vector<1x256xi32>
    %13 = arith.cmpi slt, %2, %12 : vector<1x256xi32>
    %14 = arith.andi %11, %13 : vector<1x256xi1>
    %c1_i32_3 = arith.constant 1 : i32
    %15 = vector.broadcast %c1_i32_3 : i32 to vector<1x256xi32>
    %16 = arith.cmpi sge, %2, %15 : vector<1x256xi32>
    %c15_i32_4 = arith.constant 15 : i32
    %17 = vector.broadcast %c15_i32_4 : i32 to vector<1x256xi32>
    %18 = arith.cmpi slt, %2, %17 : vector<1x256xi32>
    %c240_i32 = arith.constant 240 : i32
    %19 = vector.broadcast %c240_i32 : i32 to vector<1x256xi32>
    %20 = arith.cmpi slt, %0, %19 : vector<1x256xi32>
    %c1_i32_5 = arith.constant 1 : i32
    %21 = vector.broadcast %c1_i32_5 : i32 to vector<1x256xi32>
    %22 = arith.cmpi sge, %2, %21 : vector<1x256xi32>
    %23 = arith.andi %20, %22 : vector<1x256xi1>
    %c240_i32_6 = arith.constant 240 : i32
    %24 = vector.broadcast %c240_i32_6 : i32 to vector<1x256xi32>
    %25 = arith.cmpi slt, %0, %24 : vector<1x256xi32>
    %c240_i32_7 = arith.constant 240 : i32
    %26 = vector.broadcast %c240_i32_7 : i32 to vector<1x256xi32>
    %27 = arith.cmpi slt, %0, %26 : vector<1x256xi32>
    %c15_i32_8 = arith.constant 15 : i32
    %28 = vector.broadcast %c15_i32_8 : i32 to vector<1x256xi32>
    %29 = arith.cmpi slt, %2, %28 : vector<1x256xi32>
    %30 = arith.andi %27, %29 : vector<1x256xi1>
    %c0 = arith.constant 0 : index
    %c0_9 = arith.constant 0 : index
    %c0_10 = arith.constant 0 : index
    %31 = vector.load %arg2[%c0, %c0_9, %c0_10] : memref<2x4x36xf32, #tpu.memory_space<vmem>>, vector<1x4x36xf32>
    %32 = vector.shape_cast %31 : vector<1x4x36xf32> to vector<4x36xf32>
    %33 = arith.truncf %32 : vector<4x36xf32> to vector<4x36xbf16>
    %c1 = arith.constant 1 : index
    %c0_11 = arith.constant 0 : index
    %c0_12 = arith.constant 0 : index
    %34 = vector.load %arg2[%c1, %c0_11, %c0_12] : memref<2x4x36xf32, #tpu.memory_space<vmem>>, vector<1x4x36xf32>
    %35 = vector.shape_cast %34 : vector<1x4x36xf32> to vector<4x36xf32>
    %36 = arith.truncf %35 : vector<4x36xf32> to vector<4x36xbf16>
    %c0_13 = arith.constant 0 : index
    %c0_14 = arith.constant 0 : index
    %c0_15 = arith.constant 0 : index
    %37 = vector.load %arg3[%c0_13, %c0_14, %c0_15] : memref<2x4x1xf32, #tpu.memory_space<vmem>>, vector<1x4x1xf32>
    %38 = vector.shape_cast %37 : vector<1x4x1xf32> to vector<4x1xf32>
    %c1_16 = arith.constant 1 : index
    %c0_17 = arith.constant 0 : index
    %c0_18 = arith.constant 0 : index
    %39 = vector.load %arg3[%c1_16, %c0_17, %c0_18] : memref<2x4x1xf32, #tpu.memory_space<vmem>>, vector<1x4x1xf32>
    %40 = vector.shape_cast %39 : vector<1x4x1xf32> to vector<4x1xf32>
    %c0_19 = arith.constant 0 : index
    %c0_20 = arith.constant 0 : index
    %c0_21 = arith.constant 0 : index
    %41 = vector.load %arg1[%c0_19, %c0_20, %c0_21] : memref<1x4x256xf32, #tpu.memory_space<vmem>>, vector<1x4x256xf32>
    %42 = vector.shape_cast %41 : vector<1x4x256xf32> to vector<4x256xf32>
    %c17_i32 = arith.constant 17 : i32
    %43 = tpu.dynamic_rotate %42 by %c17_i32 dim 1 : vector<4x256xf32>, i32 -> vector<4x256xf32>
    %cst = arith.constant 0.000000e+00 : f32
    %44 = vector.shape_cast %7 : vector<1x256xi1> to vector<1x256xi1>
    %45 = vector.broadcast %44 : vector<1x256xi1> to vector<4x256xi1>
    %46 = vector.broadcast %cst : f32 to vector<4x256xf32>
    %47 = arith.select %45, %43, %46 : vector<4x256xi1>, vector<4x256xf32>
    %48 = arith.truncf %47 : vector<4x256xf32> to vector<4x256xbf16>
    %c16_i32_22 = arith.constant 16 : i32
    %49 = tpu.dynamic_rotate %42 by %c16_i32_22 dim 1 : vector<4x256xf32>, i32 -> vector<4x256xf32>
    %cst_23 = arith.constant 0.000000e+00 : f32
    %50 = vector.shape_cast %9 : vector<1x256xi1> to vector<1x256xi1>
    %51 = vector.broadcast %50 : vector<1x256xi1> to vector<4x256xi1>
    %52 = vector.broadcast %cst_23 : f32 to vector<4x256xf32>
    %53 = arith.select %51, %49, %52 : vector<4x256xi1>, vector<4x256xf32>
    %54 = arith.truncf %53 : vector<4x256xf32> to vector<4x256xbf16>
    %c15_i32_24 = arith.constant 15 : i32
    %55 = tpu.dynamic_rotate %42 by %c15_i32_24 dim 1 : vector<4x256xf32>, i32 -> vector<4x256xf32>
    %cst_25 = arith.constant 0.000000e+00 : f32
    %56 = vector.shape_cast %14 : vector<1x256xi1> to vector<1x256xi1>
    %57 = vector.broadcast %56 : vector<1x256xi1> to vector<4x256xi1>
    %58 = vector.broadcast %cst_25 : f32 to vector<4x256xf32>
    %59 = arith.select %57, %55, %58 : vector<4x256xi1>, vector<4x256xf32>
    %60 = arith.truncf %59 : vector<4x256xf32> to vector<4x256xbf16>
    %c1_i32_26 = arith.constant 1 : i32
    %61 = tpu.dynamic_rotate %42 by %c1_i32_26 dim 1 : vector<4x256xf32>, i32 -> vector<4x256xf32>
    %cst_27 = arith.constant 0.000000e+00 : f32
    %62 = vector.shape_cast %16 : vector<1x256xi1> to vector<1x256xi1>
    %63 = vector.broadcast %62 : vector<1x256xi1> to vector<4x256xi1>
    %64 = vector.broadcast %cst_27 : f32 to vector<4x256xf32>
    %65 = arith.select %63, %61, %64 : vector<4x256xi1>, vector<4x256xf32>
    %66 = arith.truncf %65 : vector<4x256xf32> to vector<4x256xbf16>
    %67 = arith.truncf %42 : vector<4x256xf32> to vector<4x256xbf16>
    %c255_i32 = arith.constant 255 : i32
    %68 = tpu.dynamic_rotate %42 by %c255_i32 dim 1 : vector<4x256xf32>, i32 -> vector<4x256xf32>
    %cst_28 = arith.constant 0.000000e+00 : f32
    %69 = vector.shape_cast %18 : vector<1x256xi1> to vector<1x256xi1>
    %70 = vector.broadcast %69 : vector<1x256xi1> to vector<4x256xi1>
    %71 = vector.broadcast %cst_28 : f32 to vector<4x256xf32>
    %72 = arith.select %70, %68, %71 : vector<4x256xi1>, vector<4x256xf32>
    %73 = arith.truncf %72 : vector<4x256xf32> to vector<4x256xbf16>
    %c241_i32 = arith.constant 241 : i32
    %74 = tpu.dynamic_rotate %42 by %c241_i32 dim 1 : vector<4x256xf32>, i32 -> vector<4x256xf32>
    %cst_29 = arith.constant 0.000000e+00 : f32
    %75 = vector.shape_cast %23 : vector<1x256xi1> to vector<1x256xi1>
    %76 = vector.broadcast %75 : vector<1x256xi1> to vector<4x256xi1>
    %77 = vector.broadcast %cst_29 : f32 to vector<4x256xf32>
    %78 = arith.select %76, %74, %77 : vector<4x256xi1>, vector<4x256xf32>
    %79 = arith.truncf %78 : vector<4x256xf32> to vector<4x256xbf16>
    %c240_i32_30 = arith.constant 240 : i32
    %80 = tpu.dynamic_rotate %42 by %c240_i32_30 dim 1 : vector<4x256xf32>, i32 -> vector<4x256xf32>
    %cst_31 = arith.constant 0.000000e+00 : f32
    %81 = vector.shape_cast %25 : vector<1x256xi1> to vector<1x256xi1>
    %82 = vector.broadcast %81 : vector<1x256xi1> to vector<4x256xi1>
    %83 = vector.broadcast %cst_31 : f32 to vector<4x256xf32>
    %84 = arith.select %82, %80, %83 : vector<4x256xi1>, vector<4x256xf32>
    %85 = arith.truncf %84 : vector<4x256xf32> to vector<4x256xbf16>
    %c239_i32 = arith.constant 239 : i32
    %86 = tpu.dynamic_rotate %42 by %c239_i32 dim 1 : vector<4x256xf32>, i32 -> vector<4x256xf32>
    %cst_32 = arith.constant 0.000000e+00 : f32
    %87 = vector.shape_cast %30 : vector<1x256xi1> to vector<1x256xi1>
    %88 = vector.broadcast %87 : vector<1x256xi1> to vector<4x256xi1>
    %89 = vector.broadcast %cst_32 : f32 to vector<4x256xf32>
    %90 = arith.select %88, %86, %89 : vector<4x256xi1>, vector<4x256xf32>
    %91 = arith.truncf %90 : vector<4x256xf32> to vector<4x256xbf16>
    %92 = tpu.concatenate %48, %54, %60, %66, %67, %73, %79, %85, %91 in 0 : vector<4x256xbf16>, vector<4x256xbf16>, vector<4x256xbf16>, vector<4x256xbf16>, vector<4x256xbf16>, vector<4x256xbf16>, vector<4x256xbf16>, vector<4x256xbf16>, vector<4x256xbf16> -> vector<36x256xbf16>
    %cst_33 = arith.constant dense<0.000000e+00> : vector<4x256xf32>
    %93 = tpu.matmul %33, %92, %cst_33 {dimension_numbers = #tpu.dot_dimension_numbers<[1], [0], [0], [1], [0, 0, 1, 1], [], []>} : vector<4x36xbf16>, vector<36x256xbf16>, vector<4x256xf32> -> vector<4x256xf32>
    %94 = vector.broadcast %38 : vector<4x1xf32> to vector<4x256xf32>
    %95 = arith.addf %93, %94 : vector<4x256xf32>
    %cst_34 = arith.constant 0.000000e+00 : f32
    %96 = vector.broadcast %cst_34 : f32 to vector<4x256xf32>
    %97 = arith.maximumf %95, %96 : vector<4x256xf32>
    %c17_i32_35 = arith.constant 17 : i32
    %98 = tpu.dynamic_rotate %97 by %c17_i32_35 dim 1 : vector<4x256xf32>, i32 -> vector<4x256xf32>
    %cst_36 = arith.constant 0.000000e+00 : f32
    %99 = vector.shape_cast %7 : vector<1x256xi1> to vector<1x256xi1>
    %100 = vector.broadcast %99 : vector<1x256xi1> to vector<4x256xi1>
    %101 = vector.broadcast %cst_36 : f32 to vector<4x256xf32>
    %102 = arith.select %100, %98, %101 : vector<4x256xi1>, vector<4x256xf32>
    %103 = arith.truncf %102 : vector<4x256xf32> to vector<4x256xbf16>
    %c16_i32_37 = arith.constant 16 : i32
    %104 = tpu.dynamic_rotate %97 by %c16_i32_37 dim 1 : vector<4x256xf32>, i32 -> vector<4x256xf32>
    %cst_38 = arith.constant 0.000000e+00 : f32
    %105 = vector.shape_cast %9 : vector<1x256xi1> to vector<1x256xi1>
    %106 = vector.broadcast %105 : vector<1x256xi1> to vector<4x256xi1>
    %107 = vector.broadcast %cst_38 : f32 to vector<4x256xf32>
    %108 = arith.select %106, %104, %107 : vector<4x256xi1>, vector<4x256xf32>
    %109 = arith.truncf %108 : vector<4x256xf32> to vector<4x256xbf16>
    %c15_i32_39 = arith.constant 15 : i32
    %110 = tpu.dynamic_rotate %97 by %c15_i32_39 dim 1 : vector<4x256xf32>, i32 -> vector<4x256xf32>
    %cst_40 = arith.constant 0.000000e+00 : f32
    %111 = vector.shape_cast %14 : vector<1x256xi1> to vector<1x256xi1>
    %112 = vector.broadcast %111 : vector<1x256xi1> to vector<4x256xi1>
    %113 = vector.broadcast %cst_40 : f32 to vector<4x256xf32>
    %114 = arith.select %112, %110, %113 : vector<4x256xi1>, vector<4x256xf32>
    %115 = arith.truncf %114 : vector<4x256xf32> to vector<4x256xbf16>
    %c1_i32_41 = arith.constant 1 : i32
    %116 = tpu.dynamic_rotate %97 by %c1_i32_41 dim 1 : vector<4x256xf32>, i32 -> vector<4x256xf32>
    %cst_42 = arith.constant 0.000000e+00 : f32
    %117 = vector.shape_cast %16 : vector<1x256xi1> to vector<1x256xi1>
    %118 = vector.broadcast %117 : vector<1x256xi1> to vector<4x256xi1>
    %119 = vector.broadcast %cst_42 : f32 to vector<4x256xf32>
    %120 = arith.select %118, %116, %119 : vector<4x256xi1>, vector<4x256xf32>
    %121 = arith.truncf %120 : vector<4x256xf32> to vector<4x256xbf16>
    %122 = arith.truncf %97 : vector<4x256xf32> to vector<4x256xbf16>
    %c255_i32_43 = arith.constant 255 : i32
    %123 = tpu.dynamic_rotate %97 by %c255_i32_43 dim 1 : vector<4x256xf32>, i32 -> vector<4x256xf32>
    %cst_44 = arith.constant 0.000000e+00 : f32
    %124 = vector.shape_cast %18 : vector<1x256xi1> to vector<1x256xi1>
    %125 = vector.broadcast %124 : vector<1x256xi1> to vector<4x256xi1>
    %126 = vector.broadcast %cst_44 : f32 to vector<4x256xf32>
    %127 = arith.select %125, %123, %126 : vector<4x256xi1>, vector<4x256xf32>
    %128 = arith.truncf %127 : vector<4x256xf32> to vector<4x256xbf16>
    %c241_i32_45 = arith.constant 241 : i32
    %129 = tpu.dynamic_rotate %97 by %c241_i32_45 dim 1 : vector<4x256xf32>, i32 -> vector<4x256xf32>
    %cst_46 = arith.constant 0.000000e+00 : f32
    %130 = vector.shape_cast %23 : vector<1x256xi1> to vector<1x256xi1>
    %131 = vector.broadcast %130 : vector<1x256xi1> to vector<4x256xi1>
    %132 = vector.broadcast %cst_46 : f32 to vector<4x256xf32>
    %133 = arith.select %131, %129, %132 : vector<4x256xi1>, vector<4x256xf32>
    %134 = arith.truncf %133 : vector<4x256xf32> to vector<4x256xbf16>
    %c240_i32_47 = arith.constant 240 : i32
    %135 = tpu.dynamic_rotate %97 by %c240_i32_47 dim 1 : vector<4x256xf32>, i32 -> vector<4x256xf32>
    %cst_48 = arith.constant 0.000000e+00 : f32
    %136 = vector.shape_cast %25 : vector<1x256xi1> to vector<1x256xi1>
    %137 = vector.broadcast %136 : vector<1x256xi1> to vector<4x256xi1>
    %138 = vector.broadcast %cst_48 : f32 to vector<4x256xf32>
    %139 = arith.select %137, %135, %138 : vector<4x256xi1>, vector<4x256xf32>
    %140 = arith.truncf %139 : vector<4x256xf32> to vector<4x256xbf16>
    %c239_i32_49 = arith.constant 239 : i32
    %141 = tpu.dynamic_rotate %97 by %c239_i32_49 dim 1 : vector<4x256xf32>, i32 -> vector<4x256xf32>
    %cst_50 = arith.constant 0.000000e+00 : f32
    %142 = vector.shape_cast %30 : vector<1x256xi1> to vector<1x256xi1>
    %143 = vector.broadcast %142 : vector<1x256xi1> to vector<4x256xi1>
    %144 = vector.broadcast %cst_50 : f32 to vector<4x256xf32>
    %145 = arith.select %143, %141, %144 : vector<4x256xi1>, vector<4x256xf32>
    %146 = arith.truncf %145 : vector<4x256xf32> to vector<4x256xbf16>
    %147 = tpu.concatenate %103, %109, %115, %121, %122, %128, %134, %140, %146 in 0 : vector<4x256xbf16>, vector<4x256xbf16>, vector<4x256xbf16>, vector<4x256xbf16>, vector<4x256xbf16>, vector<4x256xbf16>, vector<4x256xbf16>, vector<4x256xbf16>, vector<4x256xbf16> -> vector<36x256xbf16>
    %cst_51 = arith.constant dense<0.000000e+00> : vector<4x256xf32>
    %148 = tpu.matmul %36, %147, %cst_51 {dimension_numbers = #tpu.dot_dimension_numbers<[1], [0], [0], [1], [0, 0, 1, 1], [], []>} : vector<4x36xbf16>, vector<36x256xbf16>, vector<4x256xf32> -> vector<4x256xf32>
    %149 = vector.broadcast %40 : vector<4x1xf32> to vector<4x256xf32>
    %150 = arith.addf %148, %149 : vector<4x256xf32>
    %151 = arith.addf %150, %42 : vector<4x256xf32>
    %c0_52 = arith.constant 0 : index
    %c0_53 = arith.constant 0 : index
    %c0_54 = arith.constant 0 : index
    %152 = vector.load %arg4[%c0_52, %c0_53, %c0_54] : memref<1x4x256xf32, #tpu.memory_space<vmem>>, vector<1x4x256xf32>
    %153 = vector.shape_cast %152 : vector<1x4x256xf32> to vector<4x256xf32>
    %154 = vector.shape_cast %151 : vector<4x256xf32> to vector<1x4x256xf32>
    tpu.vector_store %arg4[%c0_52, %c0_53, %c0_54], %154 {strides = array<i32>} : memref<1x4x256xf32, #tpu.memory_space<vmem>>, vector<1x4x256xf32>,
    return
  }
  func.func @transform_0(%arg0: i32) -> (i32, i32, i32) {
    %c0_i32 = arith.constant 0 : i32
    %c0_i32_0 = arith.constant 0 : i32
    %c0_i32_1 = arith.constant 0 : i32
    return %arg0, %c0_i32, %c0_i32_0 : i32, i32, i32
  }
  func.func @transform_1(%arg0: i32) -> (i32, i32, i32) {
    %c0_i32 = arith.constant 0 : i32
    %c0_i32_0 = arith.constant 0 : i32
    %c0_i32_1 = arith.constant 0 : i32
    %c0_i32_2 = arith.constant 0 : i32
    return %c0_i32, %c0_i32_0, %c0_i32_1 : i32, i32, i32
  }
  func.func @transform_2(%arg0: i32) -> (i32, i32, i32) {
    %c0_i32 = arith.constant 0 : i32
    %c0_i32_0 = arith.constant 0 : i32
    %c0_i32_1 = arith.constant 0 : i32
    %c0_i32_2 = arith.constant 0 : i32
    return %c0_i32, %c0_i32_0, %c0_i32_1 : i32, i32, i32
  }
  func.func @transform_3(%arg0: i32) -> (i32, i32, i32) {
    %c0_i32 = arith.constant 0 : i32
    %c0_i32_0 = arith.constant 0 : i32
    %c0_i32_1 = arith.constant 0 : i32
    return %arg0, %c0_i32, %c0_i32_0 : i32, i32, i32
  }
}

</mosaic_0001>

<llo_original>
// kernel: tpu_custom_call.1
$region0: #{tpu_custom_call.1}
  #allocation0 [shape = 'u32[]', space=smem, size = 0x4, offset = 0x4, fixed_abs, tag = 'smem constant byte address 0x4 - core index']
  #allocation1 [shape = 'u32[144,128]{1,0:T(1,128)}', space=vmem, size = 0x12000, scoped, tag = 'internal scratch']
  %s0 = inlined_call_operand.hbm [shape: f32[2,4,256], index: 0, kind: input, shape index: {}]
  %s1 = inlined_call_operand.vmem [shape: f32[2,4,36], index: 1, kind: input, shape index: {}]
  %s2 = inlined_call_operand.vmem [shape: f32[2,4,1], index: 2, kind: input, shape index: {}]
  %s3 = inlined_call_operand.hbm [shape: f32[2,4,256], index: 3, kind: output, shape index: {}]
  %s4 = sld [smem:[#allocation0]]
  $region49: #{tpu_custom_call.1} parent=0
    _
  %s6 = ssub.s32 1, %s4
  %s7 = scalar_select 0, %s6, %s4
  $region1: #{tpu_custom_call.1} parent=0
    #allocation2 [shape = 'u8[8192]{0}', space=vmem, size = 0x2000, scoped, tag = 'input window, operand 0']
    #allocation3 [shape = 's32[2]{0}', space=sflag, size = 0x8, scoped, tag = 'scoped memory for tpu_custom_call.1']
    #allocation4 [shape = 's32[2]{0}', space=sflag, size = 0x8, scoped, tag = 'scoped memory for tpu_custom_call.1']
    #allocation5 [shape = 'u8[8192]{0}', space=vmem, size = 0x2000, scoped, tag = 'output window, operand 0']
    %8 = vsyncpa [#allocation3], 0
    %s9 = scalar_lea.sflag [#allocation3], 1
    %10 = vsyncpa %s9, 0
    %11 = vsyncpa [#allocation4], 0
    %s12 = scalar_lea.sflag [#allocation4], 1
    %13 = vsyncpa %s12, 0
    loop: start=0, step=1, limit=4
    $region2: #{tpu_custom_call.1} parent=1 // loop_pre_header
      _
    $region3: #{tpu_custom_call.1} parent=1 // loop_header
      %s15 = sphi 0, %s19
      %p16 = scmp.ge.s32.totalorder %s15, 4
      %s25 = sphi 0, %s27
      %s28 = sphi 0, %s25
      %s29 = sphi 0, %s28
      %s45 = sphi 0, %s29
      %s49 = sphi 0, %s49
      %s51 = sphi 0, %s49
      %s52 = sphi 0, %s51
      %s66 = sphi 0, %s52
      %s70 = sphi 0, %s70
      %s72 = sphi 0, %s70
      %s73 = sphi 0, %s72
      %s87 = sphi 0, %s73
      %s93 = sphi 0, %s95
      %s96 = sphi 0, %s93
      %s97 = sphi 0, %s96
      %s113 = sphi 0, %s97
    $region4: #{tpu_custom_call.1} parent=1 // loop_header_branch
      %18 = sbr.rel (%p16) target = $region8
    $region5: #{tpu_custom_call.1} parent=1 // loop_body
      %s20 = ssub.s32 %s15, 1
      %s21 = ssub.s32 %s15, 2
      %s22 = sadd.s32 %s15, 1
      %s23 = ssub.s32 %s15, %s22
      %p24 = scmp.eq.s32.totalorder %s23, 0
      %s26 = sadd.s32 %s25, 1
      %s27 = scalar_select %p24, %s25, %s26
      %p30 = pneg %p24
      %p31 = scmp.eq.s32.totalorder %s15, 1
      %p32 = por %p30, %p31
      %p33 = scmp.ne.s32.totalorder %s25, %s28
      %p34 = scmp.eq.s32.totalorder %s15, 0
      %p35 = por %p33, %p34
      %p36 = scmp.ne.s32.totalorder %s25, %s28
      %p37 = scmp.eq.s32.totalorder %s20, 1
      %p38 = por %p36, %p37
      %p39 = scmp.ne.s32.totalorder %s28, %s29
      %p40 = scmp.eq.s32.totalorder %s20, 0
      %p41 = por %p39, %p40
      %p42 = scmp.ne.s32.totalorder %s28, %s29
      %p43 = scmp.eq.s32.totalorder %s21, 1
      %p44 = por %p42, %p43
      %p46 = scmp.ne.s32.totalorder %s29, %s45
      %p47 = scmp.eq.s32.totalorder %s21, 0
      %p48 = por %p46, %p47
      %s50 = sadd.s32 %s49, 1
      %p53 = scmp.eq.s32.totalorder %s15, 1
      %p54 = scmp.ne.s32.totalorder %s49, %s51
      %p55 = scmp.eq.s32.totalorder %s15, 0
      %p56 = por %p54, %p55
      %p57 = scmp.ne.s32.totalorder %s49, %s51
      %p58 = scmp.eq.s32.totalorder %s20, 1
      %p59 = por %p57, %p58
      %p60 = scmp.ne.s32.totalorder %s51, %s52
      %p61 = scmp.eq.s32.totalorder %s20, 0
      %p62 = por %p60, %p61
      %p63 = scmp.ne.s32.totalorder %s51, %s52
      %p64 = scmp.eq.s32.totalorder %s21, 1
      %p65 = por %p63, %p64
      %p67 = scmp.ne.s32.totalorder %s52, %s66
      %p68 = scmp.eq.s32.totalorder %s21, 0
      %p69 = por %p67, %p68
      %s71 = sadd.s32 %s70, 1
      %p74 = scmp.eq.s32.totalorder %s15, 1
      %p75 = scmp.ne.s32.totalorder %s70, %s72
      %p76 = scmp.eq.s32.totalorder %s15, 0
      %p77 = por %p75, %p76
      %p78 = scmp.ne.s32.totalorder %s70, %s72
      %p79 = scmp.eq.s32.totalorder %s20, 1
      %p80 = por %p78, %p79
      %p81 = scmp.ne.s32.totalorder %s72, %s73
      %p82 = scmp.eq.s32.totalorder %s20, 0
      %p83 = por %p81, %p82
      %p84 = scmp.ne.s32.totalorder %s72, %s73
      %p85 = scmp.eq.s32.totalorder %s21, 1
      %p86 = por %p84, %p85
      %p88 = scmp.ne.s32.totalorder %s73, %s87
      %p89 = scmp.eq.s32.totalorder %s21, 0
      %p90 = por %p88, %p89
      %s91 = ssub.s32 %s15, %s22
      %p92 = scmp.eq.s32.totalorder %s91, 0
      %s94 = sadd.s32 %s93, 1
      %s95 = scalar_select %p92, %s93, %s94
      %p98 = pneg %p92
      %p99 = scmp.eq.s32.totalorder %s15, 1
      %p100 = por %p98, %p99
      %p101 = scmp.ne.s32.totalorder %s93, %s96
      %p102 = scmp.eq.s32.totalorder %s15, 0
      %p103 = por %p101, %p102
      %p104 = scmp.ne.s32.totalorder %s93, %s96
      %p105 = scmp.eq.s32.totalorder %s20, 1
      %p106 = por %p104, %p105
      %p107 = scmp.ne.s32.totalorder %s96, %s97
      %p108 = scmp.eq.s32.totalorder %s20, 0
      %p109 = por %p107, %p108
      %p110 = scmp.ne.s32.totalorder %s96, %s97
      %p111 = scmp.eq.s32.totalorder %s21, 1
      %p112 = por %p110, %p111
      %p114 = scmp.ne.s32.totalorder %s97, %s113
      %p115 = scmp.eq.s32.totalorder %s21, 0
      %p116 = por %p114, %p115
      %p117 = scmp.le.s32.totalorder 1, %s15
      %p118 = scmp.lt.s32.totalorder %s15, 3
      %p119 = pnand %p117, %p118
      %p120 = pneg %p119
      // Predicated region
      $region9: #{tpu_custom_call.1} parent=5 // pred_check
        _
      $region10: #{tpu_custom_call.1} parent=5 // pred_check_branch
        %122 = sbr.rel (%p119) target = $region12
      $region11: #{tpu_custom_call.1} parent=5 // pred_region
        %s123 = ssub.s32 %s15, 1
        // Predicated region
        $region13: #{tpu_custom_call.1} parent=11 // pred_check
          %p124 = pneg %p62
        $region14: #{tpu_custom_call.1} parent=11 // pred_check_branch
          %126 = sbr.rel (%p124) target = $region16
        $region15: #{tpu_custom_call.1} parent=11 // pred_region
          _
        $region16: #{tpu_custom_call.1} parent=11 // pred_fallthru
          _
        // Predicated region
        $region17: #{tpu_custom_call.1} parent=11 // pred_check
          %p127 = pneg %p83
        $region18: #{tpu_custom_call.1} parent=11 // pred_check_branch
          %129 = sbr.rel (%p127) target = $region20
        $region19: #{tpu_custom_call.1} parent=11 // pred_region
          _
        $region20: #{tpu_custom_call.1} parent=11 // pred_fallthru
          _
      $region12: #{tpu_custom_call.1} parent=5 // pred_fallthru
        _
      %p130 = scmp.lt.s32.totalorder %s15, 2
      // Predicated region
      $region21: #{tpu_custom_call.1} parent=5 // pred_check
        %p131 = pneg %p130
      $region22: #{tpu_custom_call.1} parent=5 // pred_check_branch
        %133 = sbr.rel (%p131) target = $region24
      $region23: #{tpu_custom_call.1} parent=5 // pred_region
        // Predicated region
        $region25: #{tpu_custom_call.1} parent=23 // pred_check
          %p134 = pneg %p35
        $region26: #{tpu_custom_call.1} parent=23 // pred_check_branch
          %136 = sbr.rel (%p134) target = $region28
        $region27: #{tpu_custom_call.1} parent=23 // pred_region
          %s137 = sand.u32 %s25, 1
          %s138 = scalar_lea.sflag [#allocation3], %s137
          %s139 = sand.u32 %s25, 1
          %s140 = smul.addr %s139, 8
          %s141 = scalar_lea.vmem [#allocation2], %s140
          %s143 = ssub.s32 128, 128
          %144 = vsyncadd %s138, %s143
          %s145 = smul.addr %s15, 2
          %s146 = smul.addr %s145, 64
          %s147 = scalar_lea.hbm %s0, %s146
          %s149 = sshll.u32 %s141, 4
          %s150 = int_to_ptr.vmem [resolvable:$true] %s149
          %152 = dma.hbm_to_vmem [thread:$0]  %s147, 128, %s150, %s138
        $region28: #{tpu_custom_call.1} parent=23 // pred_fallthru
          _
      $region24: #{tpu_custom_call.1} parent=5 // pred_fallthru
        _
      %p153 = scmp.le.s32.totalorder 1, %s15
      %p154 = scmp.lt.s32.totalorder %s15, 3
      %p155 = pnand %p153, %p154
      %p156 = pneg %p155
      // Predicated region
      $region29: #{tpu_custom_call.1} parent=5 // pred_check
        _
      $region30: #{tpu_custom_call.1} parent=5 // pred_check_branch
        %158 = sbr.rel (%p155) target = $region32
      $region31: #{tpu_custom_call.1} parent=5 // pred_region
        %s159 = ssub.s32 %s15, 1
        %s160 = sand.u32 %s28, 1
        %s161 = scalar_lea.sflag [#allocation3], %s160
        %s162 = sand.u32 %s28, 1
        %s163 = smul.addr %s162, 8
        %s164 = scalar_lea.vmem [#allocation2], %s163
        // Predicated region
        $region33: #{tpu_custom_call.1} parent=31 // pred_check
          %p165 = pneg %p41
        $region34: #{tpu_custom_call.1} parent=31 // pred_check_branch
          %167 = sbr.rel (%p165) target = $region36
        $region35: #{tpu_custom_call.1} parent=31 // pred_region
          %168 = dma.done %s161, 128
        $region36: #{tpu_custom_call.1} parent=31 // pred_fallthru
          _
        %s169 = sand.u32 %s28, 1
        %s170 = scalar_lea.sflag [#allocation3], %s169
        %s171 = sand.u32 %s28, 1
        %s172 = smul.addr %s171, 8
        %s173 = scalar_lea.vmem [#allocation2], %s172
        %p174 = pneg %p41
        %p175 = pneg %p38
        %p176 = pneg %p62
        %p177 = pneg %p59
        %p178 = pneg %p83
        %p179 = pneg %p80
        %p180 = pneg %p109
        %p181 = pneg %p106
        %s182 = sand.u32 %s96, 1
        %s183 = scalar_lea.sflag [#allocation4], %s182
        %s184 = sand.u32 %s96, 1
        %s185 = smul.addr %s184, 8
        %s186 = scalar_lea.vmem [#allocation5], %s185
        %v188 = vlaneseq
        %v189 = vand.u32 %v188, 127
        %v190 = vadd.s32 %v189, 128
        %v191 = vand.u32 %v189, 15
        %v192 = vand.u32 %v190, 15
        %vm193 = vcmp.ge.s32.totalorder %v189, 16
        %vm194 = vcmp.ge.s32.totalorder %v190, 16
        %vm195 = vcmp.ge.s32.totalorder %v191, 1
        %vm196 = vcmp.ge.s32.totalorder %v192, 1
        %vm197 = vmand %vm193, %vm195
        %vm198 = vmand %vm194, %vm196
        %vm199 = vcmp.lt.s32.totalorder %v191, 15
        %vm200 = vcmp.lt.s32.totalorder %v192, 15
        %vm201 = vmand %vm193, %vm199
        %vm202 = vmand %vm194, %vm200
        %vm203 = vcmp.lt.s32.totalorder %v189, 240
        %vm204 = vcmp.lt.s32.totalorder %v190, 240
        %vm205 = vmand %vm203, %vm195
        %vm206 = vmand %vm204, %vm196
        %vm207 = vmand %vm203, %vm199
        %vm208 = vmand %vm204, %vm200
        %v209 = vld [vmem:[%s1] sm:$0xf]
        %v210 = vpack.c.bf16 %v209, %v209
        %s211 = scalar_lea.vmem %s1, 4
        %v212 = vld [vmem:[%s211] sm:$0xf]
        %v213 = vpack.c.bf16 %v212, %v212
        %v214 = vld [vmem:[%s2] sm:$0xf]
        %s215 = scalar_lea.vmem %s2, 4
        %v216 = vld [vmem:[%s215] sm:$0xf]
        %v217 = vld [vmem:[%s164] sm:$0xff]
        %v219 = vcombine.high %v217, %v217
        %221 = vrot.lane.b32.xlu0 %v217, 17
        %v222 = vpop.permute.xlu0 %221
        %223 = vrot.lane.b32.xlu0 %v219, 17
        %v224 = vpop.permute.xlu0 %223
        %vm225 = vcmp.lt.s32.totalorder %v189, 17
        %v226 = vsel %vm225, %v222, %v224
        %v227 = vsel %vm225, %v224, %v222
        %v228 = vsel %vm197, 1, 0
        %v229 = vsel %vm198, 1, 0
        %vm230 = vcmp.eq.s32.totalorder %v228, 1
        %vm231 = vcmp.eq.s32.totalorder %v229, 1
        %v232 = vsel %vm230, %v227, 0.0
        %v233 = vsel %vm231, %v226, 0.0
        %v234 = vpack.c.bf16 %v232, %v232
        %v235 = vpack.c.bf16 %v233, %v233
        %236 = vrot.lane.b32.xlu0 %v217, 16
        %v237 = vpop.permute.xlu0 %236
        %238 = vrot.lane.b32.xlu0 %v219, 16
        %v239 = vpop.permute.xlu0 %238
        %vm240 = vcmp.lt.s32.totalorder %v189, 16
        %v241 = vsel %vm240, %v237, %v239
        %v242 = vsel %vm240, %v239, %v237
        %v243 = vsel %vm193, 1, 0
        %v244 = vsel %vm194, 1, 0
        %vm245 = vcmp.eq.s32.totalorder %v243, 1
        %vm246 = vcmp.eq.s32.totalorder %v244, 1
        %v247 = vsel %vm245, %v242, 0.0
        %v248 = vsel %vm246, %v241, 0.0
        %v249 = vpack.c.bf16 %v247, %v247
        %v250 = vpack.c.bf16 %v248, %v248
        %251 = vrot.lane.b32.xlu0 %v217, 15
        %v252 = vpop.permute.xlu0 %251
        %253 = vrot.lane.b32.xlu0 %v219, 15
        %v254 = vpop.permute.xlu0 %253
        %vm255 = vcmp.lt.s32.totalorder %v189, 15
        %v256 = vsel %vm255, %v252, %v254
        %v257 = vsel %vm255, %v254, %v252
        %v258 = vsel %vm201, 1, 0
        %v259 = vsel %vm202, 1, 0
        %vm260 = vcmp.eq.s32.totalorder %v258, 1
        %vm261 = vcmp.eq.s32.totalorder %v259, 1
        %v262 = vsel %vm260, %v257, 0.0
        %v263 = vsel %vm261, %v256, 0.0
        %v264 = vpack.c.bf16 %v262, %v262
        %v265 = vpack.c.bf16 %v263, %v263
        %266 = vrot.lane.b32.xlu0 %v217, 1
        %v267 = vpop.permute.xlu0 %266
        %268 = vrot.lane.b32.xlu0 %v219, 1
        %v269 = vpop.permute.xlu0 %268
        %vm270 = vcmp.lt.s32.totalorder %v189, 1
        %v271 = vsel %vm270, %v267, %v269
        %v272 = vsel %vm270, %v269, %v267
        %v273 = vsel %vm195, 1, 0
        %v274 = vsel %vm196, 1, 0
        %vm275 = vcmp.eq.s32.totalorder %v273, 1
        %vm276 = vcmp.eq.s32.totalorder %v274, 1
        %v277 = vsel %vm275, %v272, 0.0
        %v278 = vsel %vm276, %v271, 0.0
        %v279 = vpack.c.bf16 %v277, %v277
        %v280 = vpack.c.bf16 %v278, %v278
        %v281 = vpack.c.bf16 %v217, %v217
        %v282 = vpack.c.bf16 %v219, %v219
        %283 = vrot.lane.b32.xlu0 %v217, 127
        %v284 = vpop.permute.xlu0 %283
        %285 = vrot.lane.b32.xlu0 %v219, 127
        %v286 = vpop.permute.xlu0 %285
        %vm287 = vcmp.lt.s32.totalorder %v189, 127
        %v288 = vsel %vm287, %v284, %v286
        %v289 = vsel %vm287, %v286, %v284
        %v290 = vsel %vm199, 1, 0
        %v291 = vsel %vm200, 1, 0
        %vm292 = vcmp.eq.s32.totalorder %v290, 1
        %vm293 = vcmp.eq.s32.totalorder %v291, 1
        %v294 = vsel %vm292, %v288, 0.0
        %v295 = vsel %vm293, %v289, 0.0
        %v296 = vpack.c.bf16 %v294, %v294
        %v297 = vpack.c.bf16 %v295, %v295
        %298 = vrot.lane.b32.xlu0 %v217, 113
        %v299 = vpop.permute.xlu0 %298
        %300 = vrot.lane.b32.xlu0 %v219, 113
        %v301 = vpop.permute.xlu0 %300
        %vm302 = vcmp.lt.s32.totalorder %v189, 113
        %v303 = vsel %vm302, %v299, %v301
        %v304 = vsel %vm302, %v301, %v299
        %v305 = vsel %vm205, 1, 0
        %v306 = vsel %vm206, 1, 0
        %vm307 = vcmp.eq.s32.totalorder %v305, 1
        %vm308 = vcmp.eq.s32.totalorder %v306, 1
        %v309 = vsel %vm307, %v303, 0.0
        %v310 = vsel %vm308, %v304, 0.0
        %v311 = vpack.c.bf16 %v309, %v309
        %v312 = vpack.c.bf16 %v310, %v310
        %313 = vrot.lane.b32.xlu0 %v217, 112
        %v314 = vpop.permute.xlu0 %313
        %315 = vrot.lane.b32.xlu0 %v219, 112
        %v316 = vpop.permute.xlu0 %315
        %vm317 = vcmp.lt.s32.totalorder %v189, 112
        %v318 = vsel %vm317, %v314, %v316
        %v319 = vsel %vm317, %v316, %v314
        %v320 = vsel %vm203, 1, 0
        %v321 = vsel %vm204, 1, 0
        %vm322 = vcmp.eq.s32.totalorder %v320, 1
        %vm323 = vcmp.eq.s32.totalorder %v321, 1
        %v324 = vsel %vm322, %v318, 0.0
        %v325 = vsel %vm323, %v319, 0.0
        %v326 = vpack.c.bf16 %v324, %v324
        %v327 = vpack.c.bf16 %v325, %v325
        %328 = vrot.lane.b32.xlu0 %v217, 111
        %v329 = vpop.permute.xlu0 %328
        %330 = vrot.lane.b32.xlu0 %v219, 111
        %v331 = vpop.permute.xlu0 %330
        %vm332 = vcmp.lt.s32.totalorder %v189, 111
        %v333 = vsel %vm332, %v329, %v331
        %v334 = vsel %vm332, %v331, %v329
        %v335 = vsel %vm207, 1, 0
        %v336 = vsel %vm208, 1, 0
        %vm337 = vcmp.eq.s32.totalorder %v335, 1
        %vm338 = vcmp.eq.s32.totalorder %v336, 1
        %v339 = vsel %vm337, %v333, 0.0
        %v340 = vsel %vm338, %v334, 0.0
        %v341 = vpack.c.bf16 %v339, %v339
        %v342 = vpack.c.bf16 %v340, %v340
        %v345 = vrot.slane %v249, 6
        %v346 = vrot.slane %v250, 6
        %v349 = vrot.slane %v264, 4
        %v350 = vrot.slane %v265, 4
        %v353 = vrot.slane %v279, 2
        %v354 = vrot.slane %v280, 2
        %v357 = vrot.slane %v296, 6
        %v358 = vrot.slane %v297, 6
        %v361 = vrot.slane %v311, 4
        %v362 = vrot.slane %v312, 4
        %v365 = vrot.slane %v326, 2
        %v366 = vrot.slane %v327, 2
        %vm367 = vcmask 1041408
        %v370 = vsel %vm367, %v234, %v345
        %v373 = vsel %vm367, %v235, %v346
        %vm374 = vcmask 1043456
        %v376 = vsel %vm374, %v370, %v349
        %v378 = vsel %vm374, %v373, %v350
        %vm379 = vcmask 1045504
        %v381 = vsel %vm379, %v376, %v353
        %v384 = vsel %vm379, %v378, %v354
        %v388 = vsel %vm367, %v281, %v357
        %v391 = vsel %vm367, %v282, %v358
        %v393 = vsel %vm374, %v388, %v361
        %v395 = vsel %vm374, %v391, %v362
        %v397 = vsel %vm379, %v393, %v365
        %v400 = vsel %vm379, %v395, %v366
        %403 = vset.pattern.permute.xlu0 0
        %404 = vperm.xlu0 %403, %v214
        %v405 = vpop.permute.xlu0 %404
        %vm407 = vcmask 293888
        %v409 = vsel %vm407, %v210, 0
        %v412 = vsel %vm367, %v341, 0
        %v415 = vsel %vm367, %v342, 0
        %417 = vmatprep.subr.bf16.mxu0 0
        %418 = vmatpush1.bf16.msra.mxu0 0
        %419 = vmatprep.subr.bf16.mxu0 0
        %420 = vmatpush1.bf16.msra.mxu0 0
        %421 = vmatprep.subr.bf16.mxu0 0
        %422 = vmatpush1.bf16.msra.mxu0 0
        %423 = vmatprep.subr.bf16.mxu0 0
        %424 = vmatpush1.bf16.msra.mxu0 0
        %425 = vmatprep.subr.bf16.mxu0 0
        %426 = vmatpush1.bf16.msra.mxu0 0
        %427 = vmatprep.subr.bf16.mxu0 %v415
        %428 = vmatpush1.bf16.msra.mxu0 %v412
        %429 = vmatprep.subr.bf16.mxu0 %v400
        %430 = vmatpush1.bf16.msra.mxu0 %v397
        %431 = vmatprep.subr.bf16.mxu0 %v384
        %432 = vmatpush1.bf16.msra.mxu0 %v381
        %433 = vmatprep.subr.bf16.mxu0 0
        %434 = vmatpush2.bf16.msra.mxu0 0
        %435 = vmatprep.subr.bf16.mxu0 0
        %436 = vmatpush2.bf16.msra.mxu0 0
        %437 = vmatprep.subr.bf16.mxu0 0
        %438 = vmatpush2.bf16.msra.mxu0 0
        %439 = vmatprep.subr.bf16.mxu0 0
        %440 = vmatpush2.bf16.msra.mxu0 0
        %441 = vmatprep.subr.bf16.mxu0 0
        %442 = vmatpush2.bf16.msra.mxu0 0
        %443 = vmatprep.subr.bf16.mxu0 0
        %444 = vmatpush2.bf16.msra.mxu0 0
        %445 = vmatprep.subr.bf16.mxu0 0
        %446 = vmatpush2.bf16.msra.mxu0 0
        %447 = vmatprep.subr.bf16.mxu0 0
        %448 = vmatpush2.bf16.msra.mxu0 0
        %449 = vmatprep.mubr.bf16.mxu0 0
        %450 = vmatmul.mubr.bf16.gmra.mxu0 %v409
        %v451 = vpop.f32.mrf.mxu0
        %v452 = vadd.f32 %v405, %v451
        %v453 = vpop.f32.mrf.mxu0
        %v454 = vadd.f32 %v405, %v453
        %v455 = vpop.f32.mrf.mxu0
        %v456 = vpop.f32.mrf.mxu0
        %457 = vdwg.mxu0
        %v458 = vmax.f32 %v452, 0.0
        %v459 = vmax.f32 %v454, 0.0
        %460 = vrot.lane.b32.xlu0 %v458, 17
        %v461 = vpop.permute.xlu0 %460
        %462 = vrot.lane.b32.xlu0 %v459, 17
        %v463 = vpop.permute.xlu0 %462
        %v464 = vsel %vm225, %v461, %v463
        %v465 = vsel %vm225, %v463, %v461
        %v466 = vsel %vm230, %v465, 0.0
        %v467 = vsel %vm231, %v464, 0.0
        %v468 = vpack.c.bf16 %v466, %v466
        %v469 = vpack.c.bf16 %v467, %v467
        %470 = vrot.lane.b32.xlu0 %v458, 16
        %v471 = vpop.permute.xlu0 %470
        %472 = vrot.lane.b32.xlu0 %v459, 16
        %v473 = vpop.permute.xlu0 %472
        %v474 = vsel %vm240, %v471, %v473
        %v475 = vsel %vm240, %v473, %v471
        %v476 = vsel %vm245, %v475, 0.0
        %v477 = vsel %vm246, %v474, 0.0
        %v478 = vpack.c.bf16 %v476, %v476
        %v479 = vpack.c.bf16 %v477, %v477
        %480 = vrot.lane.b32.xlu0 %v458, 15
        %v481 = vpop.permute.xlu0 %480
        %482 = vrot.lane.b32.xlu0 %v459, 15
        %v483 = vpop.permute.xlu0 %482
        %v484 = vsel %vm255, %v481, %v483
        %v485 = vsel %vm255, %v483, %v481
        %v486 = vsel %vm260, %v485, 0.0
        %v487 = vsel %vm261, %v484, 0.0
        %v488 = vpack.c.bf16 %v486, %v486
        %v489 = vpack.c.bf16 %v487, %v487
        %490 = vrot.lane.b32.xlu0 %v458, 1
        %v491 = vpop.permute.xlu0 %490
        %492 = vrot.lane.b32.xlu0 %v459, 1
        %v493 = vpop.permute.xlu0 %492
        %v494 = vsel %vm270, %v491, %v493
        %v495 = vsel %vm270, %v493, %v491
        %v496 = vsel %vm275, %v495, 0.0
        %v497 = vsel %vm276, %v494, 0.0
        %v498 = vpack.c.bf16 %v496, %v496
        %v499 = vpack.c.bf16 %v497, %v497
        %v500 = vpack.c.bf16 %v458, %v458
        %v501 = vpack.c.bf16 %v459, %v459
        %502 = vrot.lane.b32.xlu0 %v458, 127
        %v503 = vpop.permute.xlu0 %502
        %504 = vrot.lane.b32.xlu0 %v459, 127
        %v505 = vpop.permute.xlu0 %504
        %v506 = vsel %vm287, %v503, %v505
        %v507 = vsel %vm287, %v505, %v503
        %v508 = vsel %vm292, %v506, 0.0
        %v509 = vsel %vm293, %v507, 0.0
        %v510 = vpack.c.bf16 %v508, %v508
        %v511 = vpack.c.bf16 %v509, %v509
        %512 = vrot.lane.b32.xlu0 %v458, 113
        %v513 = vpop.permute.xlu0 %512
        %514 = vrot.lane.b32.xlu0 %v459, 113
        %v515 = vpop.permute.xlu0 %514
        %v516 = vsel %vm302, %v513, %v515
        %v517 = vsel %vm302, %v515, %v513
        %v518 = vsel %vm307, %v516, 0.0
        %v519 = vsel %vm308, %v517, 0.0
        %v520 = vpack.c.bf16 %v518, %v518
        %v521 = vpack.c.bf16 %v519, %v519
        %522 = vrot.lane.b32.xlu0 %v458, 112
        %v523 = vpop.permute.xlu0 %522
        %524 = vrot.lane.b32.xlu0 %v459, 112
        %v525 = vpop.permute.xlu0 %524
        %v526 = vsel %vm317, %v523, %v525
        %v527 = vsel %vm317, %v525, %v523
        %v528 = vsel %vm322, %v526, 0.0
        %v529 = vsel %vm323, %v527, 0.0
        %v530 = vpack.c.bf16 %v528, %v528
        %v531 = vpack.c.bf16 %v529, %v529
        %532 = vrot.lane.b32.xlu0 %v458, 111
        %v533 = vpop.permute.xlu0 %532
        %534 = vrot.lane.b32.xlu0 %v459, 111
        %v535 = vpop.permute.xlu0 %534
        %v536 = vsel %vm332, %v533, %v535
        %v537 = vsel %vm332, %v535, %v533
        %v538 = vsel %vm337, %v536, 0.0
        %v539 = vsel %vm338, %v537, 0.0
        %v540 = vpack.c.bf16 %v538, %v538
        %v541 = vpack.c.bf16 %v539, %v539
        %v544 = vrot.slane %v478, 6
        %v545 = vrot.slane %v479, 6
        %v548 = vrot.slane %v488, 4
        %v549 = vrot.slane %v489, 4
        %v552 = vrot.slane %v498, 2
        %v553 = vrot.slane %v499, 2
        %v556 = vrot.slane %v510, 6
        %v557 = vrot.slane %v511, 6
        %v560 = vrot.slane %v520, 4
        %v561 = vrot.slane %v521, 4
        %v564 = vrot.slane %v530, 2
        %v565 = vrot.slane %v531, 2
        %v568 = vsel %vm367, %v468, %v544
        %v571 = vsel %vm367, %v469, %v545
        %v573 = vsel %vm374, %v568, %v548
        %v575 = vsel %vm374, %v571, %v549
        %v577 = vsel %vm379, %v573, %v552
        %v580 = vsel %vm379, %v575, %v553
        %v584 = vsel %vm367, %v500, %v556
        %v587 = vsel %vm367, %v501, %v557
        %v589 = vsel %vm374, %v584, %v560
        %v591 = vsel %vm374, %v587, %v561
        %v593 = vsel %vm379, %v589, %v564
        %v596 = vsel %vm379, %v591, %v565
        %599 = vset.pattern.permute.xlu0 0
        %600 = vperm.xlu0 %599, %v216
        %v601 = vpop.permute.xlu0 %600
        %v604 = vsel %vm407, %v213, 0
        %v607 = vsel %vm367, %v540, 0
        %v610 = vsel %vm367, %v541, 0
        %612 = vmatprep.subr.bf16.mxu0 0
        %613 = vmatpush1.bf16.msra.mxu0 0
        %614 = vmatprep.subr.bf16.mxu0 0
        %615 = vmatpush1.bf16.msra.mxu0 0
        %616 = vmatprep.subr.bf16.mxu0 0
        %617 = vmatpush1.bf16.msra.mxu0 0
        %618 = vmatprep.subr.bf16.mxu0 0
        %619 = vmatpush1.bf16.msra.mxu0 0
        %620 = vmatprep.subr.bf16.mxu0 0
        %621 = vmatpush1.bf16.msra.mxu0 0
        %622 = vmatprep.subr.bf16.mxu0 %v610
        %623 = vmatpush1.bf16.msra.mxu0 %v607
        %624 = vmatprep.subr.bf16.mxu0 %v596
        %625 = vmatpush1.bf16.msra.mxu0 %v593
        %626 = vmatprep.subr.bf16.mxu0 %v580
        %627 = vmatpush1.bf16.msra.mxu0 %v577
        %628 = vmatprep.subr.bf16.mxu0 0
        %629 = vmatpush2.bf16.msra.mxu0 0
        %630 = vmatprep.subr.bf16.mxu0 0
        %631 = vmatpush2.bf16.msra.mxu0 0
        %632 = vmatprep.subr.bf16.mxu0 0
        %633 = vmatpush2.bf16.msra.mxu0 0
        %634 = vmatprep.subr.bf16.mxu0 0
        %635 = vmatpush2.bf16.msra.mxu0 0
        %636 = vmatprep.subr.bf16.mxu0 0
        %637 = vmatpush2.bf16.msra.mxu0 0
        %638 = vmatprep.subr.bf16.mxu0 0
        %639 = vmatpush2.bf16.msra.mxu0 0
        %640 = vmatprep.subr.bf16.mxu0 0
        %641 = vmatpush2.bf16.msra.mxu0 0
        %642 = vmatprep.subr.bf16.mxu0 0
        %643 = vmatpush2.bf16.msra.mxu0 0
        %644 = vmatprep.mubr.bf16.mxu0 0
        %645 = vmatmul.mubr.bf16.gmra.mxu0 %v604
        %v646 = vpop.f32.mrf.mxu0
        %v647 = vadd.f32 %v601, %v646
        %v648 = vpop.f32.mrf.mxu0
        %v649 = vadd.f32 %v601, %v648
        %v650 = vpop.f32.mrf.mxu0
        %v651 = vpop.f32.mrf.mxu0
        %652 = vdwg.mxu0
        %v653 = vadd.f32 %v647, %v217
        %v654 = vadd.f32 %v649, %v219
        %v657 = vcombine.low %v653, %v654
        %659 = vst [vmem:[%s186] sm:$0xff] %v657
        %s660 = sand.u32 %s96, 1
        %s661 = scalar_lea.sflag [#allocation4], %s660
        %s662 = sand.u32 %s96, 1
        %s663 = smul.addr %s662, 8
        %s664 = scalar_lea.vmem [#allocation5], %s663
        // Predicated region
        $region37: #{tpu_custom_call.1} parent=31 // pred_check
          %p665 = pneg %p106
        $region38: #{tpu_custom_call.1} parent=31 // pred_check_branch
          %667 = sbr.rel (%p665) target = $region40
        $region39: #{tpu_custom_call.1} parent=31 // pred_region
          %s669 = ssub.s32 128, 128
          %670 = vsyncadd %s661, %s669
          %s671 = smul.addr %s20, 2
          %s672 = smul.addr %s671, 64
          %s673 = scalar_lea.hbm %s3, %s672
          %s675 = sshll.u32 %s664, 4
          %s676 = int_to_ptr.vmem [resolvable:$true] %s675
          %678 = dma.vmem_to_hbm [thread:$0]  %s676, 128, %s673, %s661
        $region40: #{tpu_custom_call.1} parent=31 // pred_fallthru
          _
      $region32: #{tpu_custom_call.1} parent=5 // pred_fallthru
        _
      %p679 = scmp.le.s32.totalorder 2, %s15
      // Predicated region
      $region41: #{tpu_custom_call.1} parent=5 // pred_check
        %p680 = pneg %p679
      $region42: #{tpu_custom_call.1} parent=5 // pred_check_branch
        %682 = sbr.rel (%p680) target = $region44
      $region43: #{tpu_custom_call.1} parent=5 // pred_region
        %s683 = ssub.s32 %s15, 2
        // Predicated region
        $region45: #{tpu_custom_call.1} parent=43 // pred_check
          %p684 = pneg %p112
        $region46: #{tpu_custom_call.1} parent=43 // pred_check_branch
          %686 = sbr.rel (%p684) target = $region48
        $region47: #{tpu_custom_call.1} parent=43 // pred_region
          %s687 = sand.u32 %s97, 1
          %s688 = scalar_lea.sflag [#allocation4], %s687
          %s689 = sand.u32 %s97, 1
          %s690 = smul.addr %s689, 8
          %s691 = scalar_lea.vmem [#allocation5], %s690
          %692 = dma.done %s688, 128
        $region48: #{tpu_custom_call.1} parent=43 // pred_fallthru
          _
      $region44: #{tpu_custom_call.1} parent=5 // pred_fallthru
        _
    $region6: #{tpu_custom_call.1} parent=1 // loop_footer
      %s19 = sadd.s32 1, %s15
    $region7: #{tpu_custom_call.1} parent=1 // loop_footer_branch
      %14 = sbr.rel target = $region3
    $region8: #{tpu_custom_call.1} parent=1 // loop_exit
      _
    %693 = vsyncpa [#allocation3], 1
    %s694 = scalar_lea.sflag [#allocation3], 1
    %695 = vsyncpa %s694, 1
    %696 = vsyncpa [#allocation4], 1
    %s697 = scalar_lea.sflag [#allocation4], 1
    %698 = vsyncpa %s697, 1

</llo_original>
